<compile_context>
chip_gen: v6e
topology: v6e:2x2x1
jax: 0.10.0
libtpu: 0.0.40
codegen_flags: <defaults>
</compile_context>

<pallas_src>
import jax
import jax.numpy as jnp
from jax.experimental import pallas as pl
from jax.experimental.pallas import tpu as pltpu


def _gather_kernel(labels_ref, table_hbm, out_ref, rows_vmem, copy_sem):
    # labels_ref : (B_pad,) int32 in SMEM (scalar prefetch)
    # table_hbm  : (n_classes, D_pad) in HBM (pl.ANY, never auto-DMA'd)
    # out_ref    : (TILE_B, D_pad) VMEM output block
    # rows_vmem  : (TILE_B, D_pad) VMEM staging buffer
    # copy_sem   : (1,) DMA semaphore shared by all row copies of this tile
    tile_b, _ = out_ref.shape
    base = pl.program_id(0) * tile_b

    # Issue all row-gather DMAs (kept in flight together), then drain them.
    # All copies are the same size, so a single shared semaphore is safe:
    # each wait retires one row's worth of bytes.
    for r in range(tile_b):
        idx = labels_ref[base + r]
        pltpu.make_async_copy(
            table_hbm.at[pl.ds(idx, 1), :],
            rows_vmem.at[pl.ds(r, 1), :],
            copy_sem.at[0],
        ).start()
    for r in range(tile_b):
        pltpu.make_async_copy(
            table_hbm.at[pl.ds(0, 1), :],      # shape-only descriptor for wait
            rows_vmem.at[pl.ds(r, 1), :],
            copy_sem.at[0],
        ).wait()

    # Lane-dense (D_pad % 128 == 0) full-tile store into the output block.
    out_ref[...] = rows_vmem[...]


def label_embedder(labels: jax.Array, table: jax.Array, *, tile_b: int = 256) -> jax.Array:
    """Pallas equivalent of LabelEmbedder.forward (embedding row gather).

    labels: (B,) integer class ids
    table : (n_classes, D) embedding table
    returns (B, D) with the same dtype as `table`
    """
    assert labels.ndim == 1 and table.ndim == 2
    (b,) = labels.shape
    n_classes, d = table.shape

    # Clamp out-of-range ids so the row-gather DMA can never go OOB.
    labels = jnp.clip(labels.astype(jnp.int32), 0, n_classes - 1)

    # Batch tiling: cap the tile at the batch and pad the batch to a multiple.
    tile_b = max(1, min(tile_b, b))
    b_pad = -(-b // tile_b) * tile_b
    if b_pad != b:
        labels = jnp.pad(labels, (0, b_pad - b))           # pad with valid id 0

    # Lane-dense embedding dim (multiple of 128); sliced back below.
    d_pad = -(-d // 128) * 128
    table_p = table if d_pad == d else jnp.pad(table, ((0, 0), (0, d_pad - d)))

    itemsize = jnp.dtype(table.dtype).itemsize
    grid = (b_pad // tile_b,)

    out = pl.pallas_call(
        _gather_kernel,
        out_shape=jax.ShapeDtypeStruct((b_pad, d_pad), table.dtype),
        grid_spec=pltpu.PrefetchScalarGridSpec(
            num_scalar_prefetch=1,                          # labels -> SMEM
            grid=grid,
            in_specs=[pl.BlockSpec(memory_space=pl.ANY)],   # table stays in HBM
            out_specs=pl.BlockSpec((tile_b, d_pad), lambda i, labels: (i, 0)),
            scratch_shapes=[
                pltpu.VMEM((tile_b, d_pad), table.dtype),   # DMA staging
                pltpu.SemaphoreType.DMA((1,)),
            ],
        ),
        compiler_params=pltpu.CompilerParams(
            dimension_semantics=("parallel",),              # megacore split on v7x
        ),
        cost_estimate=pl.CostEstimate(
            flops=0,
            transcendentals=0,
            bytes_accessed=2 * b_pad * d_pad * itemsize + 4 * b_pad,
        ),
    )(labels, table_p)

    return out[:b, :d]


if __name__ == "__main__":
    # Module config (small, consistent with LabelEmbedder(n_classes, embedding_dim))
    n_classes = 10
    embedding_dim = 32
    batch = 8

    key = jax.random.PRNGKey(0)
    k_labels, k_table = jax.random.split(key)

    # Deterministic parameter init: nn.Embedding default is N(0, 1).
    table = jax.random.normal(k_table, (n_classes, embedding_dim), dtype=jnp.float32)

    # Example input: integer class labels, shape (B,)
    labels = jax.random.randint(k_labels, (batch,), 0, n_classes, dtype=jnp.int32)

    out = jax.block_until_ready(label_embedder(labels, table))

    # Reference check against a plain JAX gather (same semantics as nn.Embedding)
    ref = jnp.take(table, labels, axis=0)
    assert out.shape == (batch, embedding_dim)
    assert out.dtype == table.dtype
    assert jnp.allclose(out, ref), "mismatch vs reference embedding lookup"

    print("KERNEL_OK")
</pallas_src>

<mosaic_0001>
module attributes {stable_mosaic.version = 11 : i64} {
  func.func @_gather_kernel(%arg0: i32, %arg1: memref<8xi32, #tpu.memory_space<smem>>, %arg2: memref<10x128xf32, #tpu.memory_space<any>>, %arg3: memref<8x128xf32, #tpu.memory_space<vmem>>, %arg4: memref<8x128xf32, #tpu.memory_space<vmem>>, %arg5: memref<1x!tpu.dma_semaphore, #tpu.memory_space<semaphore_mem>>) attributes {dimension_semantics = [#tpu.dimension_semantics<parallel>], iteration_bounds = array<i64: 1>, scalar_prefetch = 1 : i64, scratch_operands = 2 : i64, tpu.core_type = #tpu.core_type<tc>, window_params = [{}, {transform_indices = @transform_1, window_bounds = array<i64: 8, 128>}]} {
    %c8_i32 = arith.constant 8 : i32
    %0 = arith.muli %arg0, %c8_i32 : i32
    %c0_i32 = arith.constant 0 : i32
    %1 = arith.addi %0, %c0_i32 : i32
    %2 = arith.index_cast %1 : i32 to index
    %3 = memref.load %arg1[%2] : memref<8xi32, #tpu.memory_space<smem>>
    %c0_i32_0 = arith.constant 0 : i32
    %c0_i32_1 = arith.constant 0 : i32
    %4 = tpu.memref_slice %arg2[%3, %c0_i32_1] : memref<10x128xf32, #tpu.memory_space<any>> -> memref<1x128xf32, #tpu.memory_space<any>>
    %c0_i32_2 = arith.constant 0 : i32
    %c0_i32_3 = arith.constant 0 : i32
    %5 = tpu.memref_slice %arg4[%c0_i32_2, %c0_i32_3] : memref<8x128xf32, #tpu.memory_space<vmem>> -> memref<1x128xf32, #tpu.memory_space<vmem>>
    %6 = tpu.memref_slice %arg5[%c0_i32_0] : memref<1x!tpu.dma_semaphore, #tpu.memory_space<semaphore_mem>> -> memref<1x!tpu.dma_semaphore, #tpu.memory_space<semaphore_mem>>
    %7 = tpu.memref_squeeze %6 : memref<1x!tpu.dma_semaphore, #tpu.memory_space<semaphore_mem>> -> memref<!tpu.dma_semaphore, #tpu.memory_space<semaphore_mem>>
    tpu.enqueue_dma source(%4 : memref<1x128xf32, #tpu.memory_space<any>>) target(%5 : memref<1x128xf32, #tpu.memory_space<vmem>>) target_semaphore(%7 : memref<!tpu.dma_semaphore, #tpu.memory_space<semaphore_mem>>)
    %c1_i32 = arith.constant 1 : i32
    %8 = arith.addi %0, %c1_i32 : i32
    %9 = arith.index_cast %8 : i32 to index
    %10 = memref.load %arg1[%9] : memref<8xi32, #tpu.memory_space<smem>>
    %c0_i32_4 = arith.constant 0 : i32
    %c0_i32_5 = arith.constant 0 : i32
    %11 = tpu.memref_slice %arg2[%10, %c0_i32_5] : memref<10x128xf32, #tpu.memory_space<any>> -> memref<1x128xf32, #tpu.memory_space<any>>
    %c1_i32_6 = arith.constant 1 : i32
    %c0_i32_7 = arith.constant 0 : i32
    %12 = tpu.memref_slice %arg4[%c1_i32_6, %c0_i32_7] : memref<8x128xf32, #tpu.memory_space<vmem>> -> memref<1x128xf32, #tpu.memory_space<vmem>>
    %13 = tpu.memref_slice %arg5[%c0_i32_4] : memref<1x!tpu.dma_semaphore, #tpu.memory_space<semaphore_mem>> -> memref<1x!tpu.dma_semaphore, #tpu.memory_space<semaphore_mem>>
    %14 = tpu.memref_squeeze %13 : memref<1x!tpu.dma_semaphore, #tpu.memory_space<semaphore_mem>> -> memref<!tpu.dma_semaphore, #tpu.memory_space<semaphore_mem>>
    tpu.enqueue_dma source(%11 : memref<1x128xf32, #tpu.memory_space<any>>) target(%12 : memref<1x128xf32, #tpu.memory_space<vmem>>) target_semaphore(%14 : memref<!tpu.dma_semaphore, #tpu.memory_space<semaphore_mem>>)
    %c2_i32 = arith.constant 2 : i32
    %15 = arith.addi %0, %c2_i32 : i32
    %16 = arith.index_cast %15 : i32 to index
    %17 = memref.load %arg1[%16] : memref<8xi32, #tpu.memory_space<smem>>
    %c0_i32_8 = arith.constant 0 : i32
    %c0_i32_9 = arith.constant 0 : i32
    %18 = tpu.memref_slice %arg2[%17, %c0_i32_9] : memref<10x128xf32, #tpu.memory_space<any>> -> memref<1x128xf32, #tpu.memory_space<any>>
    %c2_i32_10 = arith.constant 2 : i32
    %c0_i32_11 = arith.constant 0 : i32
    %19 = tpu.memref_slice %arg4[%c2_i32_10, %c0_i32_11] : memref<8x128xf32, #tpu.memory_space<vmem>> -> memref<1x128xf32, #tpu.memory_space<vmem>>
    %20 = tpu.memref_slice %arg5[%c0_i32_8] : memref<1x!tpu.dma_semaphore, #tpu.memory_space<semaphore_mem>> -> memref<1x!tpu.dma_semaphore, #tpu.memory_space<semaphore_mem>>
    %21 = tpu.memref_squeeze %20 : memref<1x!tpu.dma_semaphore, #tpu.memory_space<semaphore_mem>> -> memref<!tpu.dma_semaphore, #tpu.memory_space<semaphore_mem>>
    tpu.enqueue_dma source(%18 : memref<1x128xf32, #tpu.memory_space<any>>) target(%19 : memref<1x128xf32, #tpu.memory_space<vmem>>) target_semaphore(%21 : memref<!tpu.dma_semaphore, #tpu.memory_space<semaphore_mem>>)
    %c3_i32 = arith.constant 3 : i32
    %22 = arith.addi %0, %c3_i32 : i32
    %23 = arith.index_cast %22 : i32 to index
    %24 = memref.load %arg1[%23] : memref<8xi32, #tpu.memory_space<smem>>
    %c0_i32_12 = arith.constant 0 : i32
    %c0_i32_13 = arith.constant 0 : i32
    %25 = tpu.memref_slice %arg2[%24, %c0_i32_13] : memref<10x128xf32, #tpu.memory_space<any>> -> memref<1x128xf32, #tpu.memory_space<any>>
    %c3_i32_14 = arith.constant 3 : i32
    %c0_i32_15 = arith.constant 0 : i32
    %26 = tpu.memref_slice %arg4[%c3_i32_14, %c0_i32_15] : memref<8x128xf32, #tpu.memory_space<vmem>> -> memref<1x128xf32, #tpu.memory_space<vmem>>
    %27 = tpu.memref_slice %arg5[%c0_i32_12] : memref<1x!tpu.dma_semaphore, #tpu.memory_space<semaphore_mem>> -> memref<1x!tpu.dma_semaphore, #tpu.memory_space<semaphore_mem>>
    %28 = tpu.memref_squeeze %27 : memref<1x!tpu.dma_semaphore, #tpu.memory_space<semaphore_mem>> -> memref<!tpu.dma_semaphore, #tpu.memory_space<semaphore_mem>>
    tpu.enqueue_dma source(%25 : memref<1x128xf32, #tpu.memory_space<any>>) target(%26 : memref<1x128xf32, #tpu.memory_space<vmem>>) target_semaphore(%28 : memref<!tpu.dma_semaphore, #tpu.memory_space<semaphore_mem>>)
    %c4_i32 = arith.constant 4 : i32
    %29 = arith.addi %0, %c4_i32 : i32
    %30 = arith.index_cast %29 : i32 to index
    %31 = memref.load %arg1[%30] : memref<8xi32, #tpu.memory_space<smem>>
    %c0_i32_16 = arith.constant 0 : i32
    %c0_i32_17 = arith.constant 0 : i32
    %32 = tpu.memref_slice %arg2[%31, %c0_i32_17] : memref<10x128xf32, #tpu.memory_space<any>> -> memref<1x128xf32, #tpu.memory_space<any>>
    %c4_i32_18 = arith.constant 4 : i32
    %c0_i32_19 = arith.constant 0 : i32
    %33 = tpu.memref_slice %arg4[%c4_i32_18, %c0_i32_19] : memref<8x128xf32, #tpu.memory_space<vmem>> -> memref<1x128xf32, #tpu.memory_space<vmem>>
    %34 = tpu.memref_slice %arg5[%c0_i32_16] : memref<1x!tpu.dma_semaphore, #tpu.memory_space<semaphore_mem>> -> memref<1x!tpu.dma_semaphore, #tpu.memory_space<semaphore_mem>>
    %35 = tpu.memref_squeeze %34 : memref<1x!tpu.dma_semaphore, #tpu.memory_space<semaphore_mem>> -> memref<!tpu.dma_semaphore, #tpu.memory_space<semaphore_mem>>
    tpu.enqueue_dma source(%32 : memref<1x128xf32, #tpu.memory_space<any>>) target(%33 : memref<1x128xf32, #tpu.memory_space<vmem>>) target_semaphore(%35 : memref<!tpu.dma_semaphore, #tpu.memory_space<semaphore_mem>>)
    %c5_i32 = arith.constant 5 : i32
    %36 = arith.addi %0, %c5_i32 : i32
    %37 = arith.index_cast %36 : i32 to index
    %38 = memref.load %arg1[%37] : memref<8xi32, #tpu.memory_space<smem>>
    %c0_i32_20 = arith.constant 0 : i32
    %c0_i32_21 = arith.constant 0 : i32
    %39 = tpu.memref_slice %arg2[%38, %c0_i32_21] : memref<10x128xf32, #tpu.memory_space<any>> -> memref<1x128xf32, #tpu.memory_space<any>>
    %c5_i32_22 = arith.constant 5 : i32
    %c0_i32_23 = arith.constant 0 : i32
    %40 = tpu.memref_slice %arg4[%c5_i32_22, %c0_i32_23] : memref<8x128xf32, #tpu.memory_space<vmem>> -> memref<1x128xf32, #tpu.memory_space<vmem>>
    %41 = tpu.memref_slice %arg5[%c0_i32_20] : memref<1x!tpu.dma_semaphore, #tpu.memory_space<semaphore_mem>> -> memref<1x!tpu.dma_semaphore, #tpu.memory_space<semaphore_mem>>
    %42 = tpu.memref_squeeze %41 : memref<1x!tpu.dma_semaphore, #tpu.memory_space<semaphore_mem>> -> memref<!tpu.dma_semaphore, #tpu.memory_space<semaphore_mem>>
    tpu.enqueue_dma source(%39 : memref<1x128xf32, #tpu.memory_space<any>>) target(%40 : memref<1x128xf32, #tpu.memory_space<vmem>>) target_semaphore(%42 : memref<!tpu.dma_semaphore, #tpu.memory_space<semaphore_mem>>)
    %c6_i32 = arith.constant 6 : i32
    %43 = arith.addi %0, %c6_i32 : i32
    %44 = arith.index_cast %43 : i32 to index
    %45 = memref.load %arg1[%44] : memref<8xi32, #tpu.memory_space<smem>>
    %c0_i32_24 = arith.constant 0 : i32
    %c0_i32_25 = arith.constant 0 : i32
    %46 = tpu.memref_slice %arg2[%45, %c0_i32_25] : memref<10x128xf32, #tpu.memory_space<any>> -> memref<1x128xf32, #tpu.memory_space<any>>
    %c6_i32_26 = arith.constant 6 : i32
    %c0_i32_27 = arith.constant 0 : i32
    %47 = tpu.memref_slice %arg4[%c6_i32_26, %c0_i32_27] : memref<8x128xf32, #tpu.memory_space<vmem>> -> memref<1x128xf32, #tpu.memory_space<vmem>>
    %48 = tpu.memref_slice %arg5[%c0_i32_24] : memref<1x!tpu.dma_semaphore, #tpu.memory_space<semaphore_mem>> -> memref<1x!tpu.dma_semaphore, #tpu.memory_space<semaphore_mem>>
    %49 = tpu.memref_squeeze %48 : memref<1x!tpu.dma_semaphore, #tpu.memory_space<semaphore_mem>> -> memref<!tpu.dma_semaphore, #tpu.memory_space<semaphore_mem>>
    tpu.enqueue_dma source(%46 : memref<1x128xf32, #tpu.memory_space<any>>) target(%47 : memref<1x128xf32, #tpu.memory_space<vmem>>) target_semaphore(%49 : memref<!tpu.dma_semaphore, #tpu.memory_space<semaphore_mem>>)
    %c7_i32 = arith.constant 7 : i32
    %50 = arith.addi %0, %c7_i32 : i32
    %51 = arith.index_cast %50 : i32 to index
    %52 = memref.load %arg1[%51] : memref<8xi32, #tpu.memory_space<smem>>
    %c0_i32_28 = arith.constant 0 : i32
    %c0_i32_29 = arith.constant 0 : i32
    %53 = tpu.memref_slice %arg2[%52, %c0_i32_29] : memref<10x128xf32, #tpu.memory_space<any>> -> memref<1x128xf32, #tpu.memory_space<any>>
    %c7_i32_30 = arith.constant 7 : i32
    %c0_i32_31 = arith.constant 0 : i32
    %54 = tpu.memref_slice %arg4[%c7_i32_30, %c0_i32_31] : memref<8x128xf32, #tpu.memory_space<vmem>> -> memref<1x128xf32, #tpu.memory_space<vmem>>
    %55 = tpu.memref_slice %arg5[%c0_i32_28] : memref<1x!tpu.dma_semaphore, #tpu.memory_space<semaphore_mem>> -> memref<1x!tpu.dma_semaphore, #tpu.memory_space<semaphore_mem>>
    %56 = tpu.memref_squeeze %55 : memref<1x!tpu.dma_semaphore, #tpu.memory_space<semaphore_mem>> -> memref<!tpu.dma_semaphore, #tpu.memory_space<semaphore_mem>>
    tpu.enqueue_dma source(%53 : memref<1x128xf32, #tpu.memory_space<any>>) target(%54 : memref<1x128xf32, #tpu.memory_space<vmem>>) target_semaphore(%56 : memref<!tpu.dma_semaphore, #tpu.memory_space<semaphore_mem>>)
    %c0_i32_32 = arith.constant 0 : i32
    %c0_i32_33 = arith.constant 0 : i32
    %c0_i32_34 = arith.constant 0 : i32
    %57 = tpu.memref_slice %arg2[%c0_i32_33, %c0_i32_34] : memref<10x128xf32, #tpu.memory_space<any>> -> memref<1x128xf32, #tpu.memory_space<any>>
    %c0_i32_35 = arith.constant 0 : i32
    %c0_i32_36 = arith.constant 0 : i32
    %58 = tpu.memref_slice %arg4[%c0_i32_35, %c0_i32_36] : memref<8x128xf32, #tpu.memory_space<vmem>> -> memref<1x128xf32, #tpu.memory_space<vmem>>
    %59 = tpu.memref_slice %arg5[%c0_i32_32] : memref<1x!tpu.dma_semaphore, #tpu.memory_space<semaphore_mem>> -> memref<1x!tpu.dma_semaphore, #tpu.memory_space<semaphore_mem>>
    %60 = tpu.memref_squeeze %59 : memref<1x!tpu.dma_semaphore, #tpu.memory_space<semaphore_mem>> -> memref<!tpu.dma_semaphore, #tpu.memory_space<semaphore_mem>>
    tpu.wait_dma2 semaphore(%60 : memref<!tpu.dma_semaphore, #tpu.memory_space<semaphore_mem>>) src(%57 : memref<1x128xf32, #tpu.memory_space<any>>) dst(%58 : memref<1x128xf32, #tpu.memory_space<vmem>>)
    %c0_i32_37 = arith.constant 0 : i32
    %c0_i32_38 = arith.constant 0 : i32
    %c0_i32_39 = arith.constant 0 : i32
    %61 = tpu.memref_slice %arg2[%c0_i32_38, %c0_i32_39] : memref<10x128xf32, #tpu.memory_space<any>> -> memref<1x128xf32, #tpu.memory_space<any>>
    %c1_i32_40 = arith.constant 1 : i32
    %c0_i32_41 = arith.constant 0 : i32
    %62 = tpu.memref_slice %arg4[%c1_i32_40, %c0_i32_41] : memref<8x128xf32, #tpu.memory_space<vmem>> -> memref<1x128xf32, #tpu.memory_space<vmem>>
    %63 = tpu.memref_slice %arg5[%c0_i32_37] : memref<1x!tpu.dma_semaphore, #tpu.memory_space<semaphore_mem>> -> memref<1x!tpu.dma_semaphore, #tpu.memory_space<semaphore_mem>>
    %64 = tpu.memref_squeeze %63 : memref<1x!tpu.dma_semaphore, #tpu.memory_space<semaphore_mem>> -> memref<!tpu.dma_semaphore, #tpu.memory_space<semaphore_mem>>
    tpu.wait_dma2 semaphore(%64 : memref<!tpu.dma_semaphore, #tpu.memory_space<semaphore_mem>>) src(%61 : memref<1x128xf32, #tpu.memory_space<any>>) dst(%62 : memref<1x128xf32, #tpu.memory_space<vmem>>)
    %c0_i32_42 = arith.constant 0 : i32
    %c0_i32_43 = arith.constant 0 : i32
    %c0_i32_44 = arith.constant 0 : i32
    %65 = tpu.memref_slice %arg2[%c0_i32_43, %c0_i32_44] : memref<10x128xf32, #tpu.memory_space<any>> -> memref<1x128xf32, #tpu.memory_space<any>>
    %c2_i32_45 = arith.constant 2 : i32
    %c0_i32_46 = arith.constant 0 : i32
    %66 = tpu.memref_slice %arg4[%c2_i32_45, %c0_i32_46] : memref<8x128xf32, #tpu.memory_space<vmem>> -> memref<1x128xf32, #tpu.memory_space<vmem>>
    %67 = tpu.memref_slice %arg5[%c0_i32_42] : memref<1x!tpu.dma_semaphore, #tpu.memory_space<semaphore_mem>> -> memref<1x!tpu.dma_semaphore, #tpu.memory_space<semaphore_mem>>
    %68 = tpu.memref_squeeze %67 : memref<1x!tpu.dma_semaphore, #tpu.memory_space<semaphore_mem>> -> memref<!tpu.dma_semaphore, #tpu.memory_space<semaphore_mem>>
    tpu.wait_dma2 semaphore(%68 : memref<!tpu.dma_semaphore, #tpu.memory_space<semaphore_mem>>) src(%65 : memref<1x128xf32, #tpu.memory_space<any>>) dst(%66 : memref<1x128xf32, #tpu.memory_space<vmem>>)
    %c0_i32_47 = arith.constant 0 : i32
    %c0_i32_48 = arith.constant 0 : i32
    %c0_i32_49 = arith.constant 0 : i32
    %69 = tpu.memref_slice %arg2[%c0_i32_48, %c0_i32_49] : memref<10x128xf32, #tpu.memory_space<any>> -> memref<1x128xf32, #tpu.memory_space<any>>
    %c3_i32_50 = arith.constant 3 : i32
    %c0_i32_51 = arith.constant 0 : i32
    %70 = tpu.memref_slice %arg4[%c3_i32_50, %c0_i32_51] : memref<8x128xf32, #tpu.memory_space<vmem>> -> memref<1x128xf32, #tpu.memory_space<vmem>>
    %71 = tpu.memref_slice %arg5[%c0_i32_47] : memref<1x!tpu.dma_semaphore, #tpu.memory_space<semaphore_mem>> -> memref<1x!tpu.dma_semaphore, #tpu.memory_space<semaphore_mem>>
    %72 = tpu.memref_squeeze %71 : memref<1x!tpu.dma_semaphore, #tpu.memory_space<semaphore_mem>> -> memref<!tpu.dma_semaphore, #tpu.memory_space<semaphore_mem>>
    tpu.wait_dma2 semaphore(%72 : memref<!tpu.dma_semaphore, #tpu.memory_space<semaphore_mem>>) src(%69 : memref<1x128xf32, #tpu.memory_space<any>>) dst(%70 : memref<1x128xf32, #tpu.memory_space<vmem>>)
    %c0_i32_52 = arith.constant 0 : i32
    %c0_i32_53 = arith.constant 0 : i32
    %c0_i32_54 = arith.constant 0 : i32
    %73 = tpu.memref_slice %arg2[%c0_i32_53, %c0_i32_54] : memref<10x128xf32, #tpu.memory_space<any>> -> memref<1x128xf32, #tpu.memory_space<any>>
    %c4_i32_55 = arith.constant 4 : i32
    %c0_i32_56 = arith.constant 0 : i32
    %74 = tpu.memref_slice %arg4[%c4_i32_55, %c0_i32_56] : memref<8x128xf32, #tpu.memory_space<vmem>> -> memref<1x128xf32, #tpu.memory_space<vmem>>
    %75 = tpu.memref_slice %arg5[%c0_i32_52] : memref<1x!tpu.dma_semaphore, #tpu.memory_space<semaphore_mem>> -> memref<1x!tpu.dma_semaphore, #tpu.memory_space<semaphore_mem>>
    %76 = tpu.memref_squeeze %75 : memref<1x!tpu.dma_semaphore, #tpu.memory_space<semaphore_mem>> -> memref<!tpu.dma_semaphore, #tpu.memory_space<semaphore_mem>>
    tpu.wait_dma2 semaphore(%76 : memref<!tpu.dma_semaphore, #tpu.memory_space<semaphore_mem>>) src(%73 : memref<1x128xf32, #tpu.memory_space<any>>) dst(%74 : memref<1x128xf32, #tpu.memory_space<vmem>>)
    %c0_i32_57 = arith.constant 0 : i32
    %c0_i32_58 = arith.constant 0 : i32
    %c0_i32_59 = arith.constant 0 : i32
    %77 = tpu.memref_slice %arg2[%c0_i32_58, %c0_i32_59] : memref<10x128xf32, #tpu.memory_space<any>> -> memref<1x128xf32, #tpu.memory_space<any>>
    %c5_i32_60 = arith.constant 5 : i32
    %c0_i32_61 = arith.constant 0 : i32
    %78 = tpu.memref_slice %arg4[%c5_i32_60, %c0_i32_61] : memref<8x128xf32, #tpu.memory_space<vmem>> -> memref<1x128xf32, #tpu.memory_space<vmem>>
    %79 = tpu.memref_slice %arg5[%c0_i32_57] : memref<1x!tpu.dma_semaphore, #tpu.memory_space<semaphore_mem>> -> memref<1x!tpu.dma_semaphore, #tpu.memory_space<semaphore_mem>>
    %80 = tpu.memref_squeeze %79 : memref<1x!tpu.dma_semaphore, #tpu.memory_space<semaphore_mem>> -> memref<!tpu.dma_semaphore, #tpu.memory_space<semaphore_mem>>
    tpu.wait_dma2 semaphore(%80 : memref<!tpu.dma_semaphore, #tpu.memory_space<semaphore_mem>>) src(%77 : memref<1x128xf32, #tpu.memory_space<any>>) dst(%78 : memref<1x128xf32, #tpu.memory_space<vmem>>)
    %c0_i32_62 = arith.constant 0 : i32
    %c0_i32_63 = arith.constant 0 : i32
    %c0_i32_64 = arith.constant 0 : i32
    %81 = tpu.memref_slice %arg2[%c0_i32_63, %c0_i32_64] : memref<10x128xf32, #tpu.memory_space<any>> -> memref<1x128xf32, #tpu.memory_space<any>>
    %c6_i32_65 = arith.constant 6 : i32
    %c0_i32_66 = arith.constant 0 : i32
    %82 = tpu.memref_slice %arg4[%c6_i32_65, %c0_i32_66] : memref<8x128xf32, #tpu.memory_space<vmem>> -> memref<1x128xf32, #tpu.memory_space<vmem>>
    %83 = tpu.memref_slice %arg5[%c0_i32_62] : memref<1x!tpu.dma_semaphore, #tpu.memory_space<semaphore_mem>> -> memref<1x!tpu.dma_semaphore, #tpu.memory_space<semaphore_mem>>
    %84 = tpu.memref_squeeze %83 : memref<1x!tpu.dma_semaphore, #tpu.memory_space<semaphore_mem>> -> memref<!tpu.dma_semaphore, #tpu.memory_space<semaphore_mem>>
    tpu.wait_dma2 semaphore(%84 : memref<!tpu.dma_semaphore, #tpu.memory_space<semaphore_mem>>) src(%81 : memref<1x128xf32, #tpu.memory_space<any>>) dst(%82 : memref<1x128xf32, #tpu.memory_space<vmem>>)
    %c0_i32_67 = arith.constant 0 : i32
    %c0_i32_68 = arith.constant 0 : i32
    %c0_i32_69 = arith.constant 0 : i32
    %85 = tpu.memref_slice %arg2[%c0_i32_68, %c0_i32_69] : memref<10x128xf32, #tpu.memory_space<any>> -> memref<1x128xf32, #tpu.memory_space<any>>
    %c7_i32_70 = arith.constant 7 : i32
    %c0_i32_71 = arith.constant 0 : i32
    %86 = tpu.memref_slice %arg4[%c7_i32_70, %c0_i32_71] : memref<8x128xf32, #tpu.memory_space<vmem>> -> memref<1x128xf32, #tpu.memory_space<vmem>>
    %87 = tpu.memref_slice %arg5[%c0_i32_67] : memref<1x!tpu.dma_semaphore, #tpu.memory_space<semaphore_mem>> -> memref<1x!tpu.dma_semaphore, #tpu.memory_space<semaphore_mem>>
    %88 = tpu.memref_squeeze %87 : memref<1x!tpu.dma_semaphore, #tpu.memory_space<semaphore_mem>> -> memref<!tpu.dma_semaphore, #tpu.memory_space<semaphore_mem>>
    tpu.wait_dma2 semaphore(%88 : memref<!tpu.dma_semaphore, #tpu.memory_space<semaphore_mem>>) src(%85 : memref<1x128xf32, #tpu.memory_space<any>>) dst(%86 : memref<1x128xf32, #tpu.memory_space<vmem>>)
    %c0 = arith.constant 0 : index
    %c0_72 = arith.constant 0 : index
    %89 = vector.load %arg4[%c0, %c0_72] : memref<8x128xf32, #tpu.memory_space<vmem>>, vector<8x128xf32>
    %c0_73 = arith.constant 0 : index
    %c0_74 = arith.constant 0 : index
    %90 = vector.load %arg3[%c0_73, %c0_74] : memref<8x128xf32, #tpu.memory_space<vmem>>, vector<8x128xf32>
    tpu.vector_store %arg3[%c0_73, %c0_74], %89 {strides = array<i32>} : memref<8x128xf32, #tpu.memory_space<vmem>>, vector<8x128xf32>,
    return
  }
  func.func @transform_1(%arg0: i32, %arg1: memref<8xi32, #tpu.memory_space<smem>>) -> (i32, i32) {
    %c0_i32 = arith.constant 0 : i32
    %c0_i32_0 = arith.constant 0 : i32
    return %arg0, %c0_i32 : i32, i32
  }
}

</mosaic_0001>

<llo_original>
// kernel: tpu_custom_call.1
$region0: #{tpu_custom_call.1}
  #allocation0 [shape = 'u32[]', space=smem, size = 0x4, offset = 0x4, fixed_abs, tag = 'smem constant byte address 0x4 - core index']
  #allocation1 [shape = 'u32[144,128]{1,0:T(1,128)}', space=vmem, size = 0x12000, scoped, tag = 'internal scratch']
  #allocation2 [shape = 'f32[8,128]{1,0:T(8,128)}', space=vmem, size = 0x1000, scoped, tag = 'scratch operand']
  #allocation3 [shape = 's32[1]{0}', space=sflag, size = 0x4, scoped, tag = 'scratch operand']
  #allocation4 [shape = 's32[1]{0}', space=sflag, size = 0x4, scoped, tag = 'scoped memory for tpu_custom_call.1']
  #allocation5 [shape = 'u8[512]{0}', space=smem, size = 0x200, scoped, tag = 'prefetched SMEM operand 0']
  #allocation8 [shape = 's32[]', space=sflag, size = 0x4, offset = 0, fixed_abs, tag = 'sflag constant byte address 0x0 - dummy sync flag']
  #allocation9 [shape = 's32[]', space=sflag, size = 0x4, offset = 0, fixed_abs, tag = 'sflag constant byte address 0x0 - dummy sync flag']
  #allocation10 [shape = 'u32[]', space=smem, size = 0x4, offset = 0x44, fixed_abs, tag = 'smem constant byte address 0x44 - assertion arg 0']
  #allocation11 [shape = 'u32[]', space=smem, size = 0x4, offset = 0x48, fixed_abs, tag = 'smem constant byte address 0x48 - assertion arg 1']
  #allocation12 [shape = 's32[]', space=sflag, size = 0x4, offset = 0, fixed_abs, tag = 'sflag constant byte address 0x0 - dummy sync flag']
  #allocation13 [shape = 's32[]', space=sflag, size = 0x4, offset = 0, fixed_abs, tag = 'sflag constant byte address 0x0 - dummy sync flag']
  #allocation14 [shape = 's32[]', space=sflag, size = 0x4, offset = 0, fixed_abs, tag = 'sflag constant byte address 0x0 - dummy sync flag']
  #allocation15 [shape = 's32[]', space=sflag, size = 0x4, offset = 0, fixed_abs, tag = 'sflag constant byte address 0x0 - dummy sync flag']
  #allocation16 [shape = 's32[]', space=sflag, size = 0x4, offset = 0, fixed_abs, tag = 'sflag constant byte address 0x0 - dummy sync flag']
  #allocation17 [shape = 's32[]', space=sflag, size = 0x4, offset = 0, fixed_abs, tag = 'sflag constant byte address 0x0 - dummy sync flag']
  #allocation18 [shape = 's32[]', space=sflag, size = 0x4, offset = 0, fixed_abs, tag = 'sflag constant byte address 0x0 - dummy sync flag']
  #allocation19 [shape = 's32[]', space=sflag, size = 0x4, offset = 0, fixed_abs, tag = 'sflag constant byte address 0x0 - dummy sync flag']
  #allocation20 [shape = 's32[]', space=sflag, size = 0x4, offset = 0, fixed_abs, tag = 'sflag constant byte address 0x0 - dummy sync flag']
  #allocation21 [shape = 's32[]', space=sflag, size = 0x4, offset = 0, fixed_abs, tag = 'sflag constant byte address 0x0 - dummy sync flag']
  #allocation22 [shape = 's32[]', space=sflag, size = 0x4, offset = 0, fixed_abs, tag = 'sflag constant byte address 0x0 - dummy sync flag']
  #allocation23 [shape = 's32[]', space=sflag, size = 0x4, offset = 0, fixed_abs, tag = 'sflag constant byte address 0x0 - dummy sync flag']
  #allocation24 [shape = 's32[]', space=sflag, size = 0x4, offset = 0, fixed_abs, tag = 'sflag constant byte address 0x0 - dummy sync flag']
  #allocation25 [shape = 's32[]', space=sflag, size = 0x4, offset = 0, fixed_abs, tag = 'sflag constant byte address 0x0 - dummy sync flag']
  %s0 = inlined_call_operand.hbm [shape: s32[8], index: 0, kind: input, shape index: {}]
  %s1 = inlined_call_operand.hbm [shape: f32[10,128], index: 1, kind: input, shape index: {}]
  %s2 = inlined_call_operand.hbm [shape: f32[8,128], index: 2, kind: output, shape index: {}]
  %s3 = sld [smem:[#allocation0]]
  $region42: #{tpu_custom_call.1} parent=0
    _
  %s5 = ssub.s32 1, %s3
  %s6 = scalar_select 0, %s5, %s3
  %8 = dma.hbm_to_smem %s0, 16, [#allocation5], [#allocation4]
  %9 = dma.done [#allocation4], 16
  %10 = sfence
  $region1: #{tpu_custom_call.1} parent=0
    #allocation6 [shape = 'u8[4096]{0}', space=vmem, size = 0x1000, scoped, tag = 'output window, operand 0, single buffered']
    #allocation7 [shape = 's32[1]{0}', space=sflag, size = 0x4, scoped, tag = 'scoped memory for tpu_custom_call.1']
    %11 = vsyncpa [#allocation7], 0
    %s12 = smul.u32 0, 8
    %s13 = sld [smem:[#allocation5 + %s12]]
    %s14 = smul.addr %s13, 16
    %s15 = scalar_lea.hbm %s1, %s14
    // Predicated region
    $region2: #{tpu_custom_call.1} parent=1 // pred_check
      _
    $region3: #{tpu_custom_call.1} parent=1 // pred_check_branch
      %17 = sbr.rel target = $region5
    $region4: #{tpu_custom_call.1} parent=1 // pred_region
      %18 = sst [smem:[#allocation10]] [#allocation9]
      %19 = sst [smem:[#allocation11]] [#allocation8]
    $region5: #{tpu_custom_call.1} parent=1 // pred_fallthru
      _
    %21 = shalt.err (0)
    %s23 = sshll.u32 [#allocation2], 4
    %s24 = int_to_ptr.vmem [resolvable:$true] %s23
    %26 = dma.hbm_to_vmem [thread:$0]  %s15, 16, %s24, [#allocation3]
    %s27 = sadd.s32 %s12, 1
    %s28 = sld [smem:[#allocation5 + %s27]]
    %s29 = smul.addr %s28, 16
    %s30 = scalar_lea.hbm %s1, %s29
    %s31 = scalar_lea.vmem [#allocation2], 1
    // Predicated region
    $region6: #{tpu_custom_call.1} parent=1 // pred_check
      _
    $region7: #{tpu_custom_call.1} parent=1 // pred_check_branch
      %33 = sbr.rel target = $region9
    $region8: #{tpu_custom_call.1} parent=1 // pred_region
      %34 = sst [smem:[#allocation10]] [#allocation13]
      %35 = sst [smem:[#allocation11]] [#allocation12]
    $region9: #{tpu_custom_call.1} parent=1 // pred_fallthru
      _
    %37 = shalt.err (0)
    %s39 = sshll.u32 %s31, 4
    %s40 = int_to_ptr.vmem [resolvable:$true] %s39
    %42 = dma.hbm_to_vmem [thread:$0]  %s30, 16, %s40, [#allocation3]
    %s43 = sadd.s32 %s12, 2
    %s44 = sld [smem:[#allocation5 + %s43]]
    %s45 = smul.addr %s44, 16
    %s46 = scalar_lea.hbm %s1, %s45
    %s47 = scalar_lea.vmem [#allocation2], 2
    // Predicated region
    $region10: #{tpu_custom_call.1} parent=1 // pred_check
      _
    $region11: #{tpu_custom_call.1} parent=1 // pred_check_branch
      %49 = sbr.rel target = $region13
    $region12: #{tpu_custom_call.1} parent=1 // pred_region
      %50 = sst [smem:[#allocation10]] [#allocation15]
      %51 = sst [smem:[#allocation11]] [#allocation14]
    $region13: #{tpu_custom_call.1} parent=1 // pred_fallthru
      _
    %53 = shalt.err (0)
    %s55 = sshll.u32 %s47, 4
    %s56 = int_to_ptr.vmem [resolvable:$true] %s55
    %58 = dma.hbm_to_vmem [thread:$0]  %s46, 16, %s56, [#allocation3]
    %s59 = sadd.s32 %s12, 3
    %s60 = sld [smem:[#allocation5 + %s59]]
    %s61 = smul.addr %s60, 16
    %s62 = scalar_lea.hbm %s1, %s61
    %s63 = scalar_lea.vmem [#allocation2], 3
    // Predicated region
    $region14: #{tpu_custom_call.1} parent=1 // pred_check
      _
    $region15: #{tpu_custom_call.1} parent=1 // pred_check_branch
      %65 = sbr.rel target = $region17
    $region16: #{tpu_custom_call.1} parent=1 // pred_region
      %66 = sst [smem:[#allocation10]] [#allocation17]
      %67 = sst [smem:[#allocation11]] [#allocation16]
    $region17: #{tpu_custom_call.1} parent=1 // pred_fallthru
      _
    %69 = shalt.err (0)
    %s71 = sshll.u32 %s63, 4
    %s72 = int_to_ptr.vmem [resolvable:$true] %s71
    %74 = dma.hbm_to_vmem [thread:$0]  %s62, 16, %s72, [#allocation3]
    %s75 = sadd.s32 %s12, 4
    %s76 = sld [smem:[#allocation5 + %s75]]
    %s77 = smul.addr %s76, 16
    %s78 = scalar_lea.hbm %s1, %s77
    %s79 = scalar_lea.vmem [#allocation2], 4
    // Predicated region
    $region18: #{tpu_custom_call.1} parent=1 // pred_check
      _
    $region19: #{tpu_custom_call.1} parent=1 // pred_check_branch
      %81 = sbr.rel target = $region21
    $region20: #{tpu_custom_call.1} parent=1 // pred_region
      %82 = sst [smem:[#allocation10]] [#allocation19]
      %83 = sst [smem:[#allocation11]] [#allocation18]
    $region21: #{tpu_custom_call.1} parent=1 // pred_fallthru
      _
    %85 = shalt.err (0)
    %s87 = sshll.u32 %s79, 4
    %s88 = int_to_ptr.vmem [resolvable:$true] %s87
    %90 = dma.hbm_to_vmem [thread:$0]  %s78, 16, %s88, [#allocation3]
    %s91 = sadd.s32 %s12, 5
    %s92 = sld [smem:[#allocation5 + %s91]]
    %s93 = smul.addr %s92, 16
    %s94 = scalar_lea.hbm %s1, %s93
    %s95 = scalar_lea.vmem [#allocation2], 5
    // Predicated region
    $region22: #{tpu_custom_call.1} parent=1 // pred_check
      _
    $region23: #{tpu_custom_call.1} parent=1 // pred_check_branch
      %97 = sbr.rel target = $region25
    $region24: #{tpu_custom_call.1} parent=1 // pred_region
      %98 = sst [smem:[#allocation10]] [#allocation21]
      %99 = sst [smem:[#allocation11]] [#allocation20]
    $region25: #{tpu_custom_call.1} parent=1 // pred_fallthru
      _
    %101 = shalt.err (0)
    %s103 = sshll.u32 %s95, 4
    %s104 = int_to_ptr.vmem [resolvable:$true] %s103
    %106 = dma.hbm_to_vmem [thread:$0]  %s94, 16, %s104, [#allocation3]
    %s107 = sadd.s32 %s12, 6
    %s108 = sld [smem:[#allocation5 + %s107]]
    %s109 = smul.addr %s108, 16
    %s110 = scalar_lea.hbm %s1, %s109
    %s111 = scalar_lea.vmem [#allocation2], 6
    // Predicated region
    $region26: #{tpu_custom_call.1} parent=1 // pred_check
      _
    $region27: #{tpu_custom_call.1} parent=1 // pred_check_branch
      %113 = sbr.rel target = $region29
    $region28: #{tpu_custom_call.1} parent=1 // pred_region
      %114 = sst [smem:[#allocation10]] [#allocation23]
      %115 = sst [smem:[#allocation11]] [#allocation22]
    $region29: #{tpu_custom_call.1} parent=1 // pred_fallthru
      _
    %117 = shalt.err (0)
    %s119 = sshll.u32 %s111, 4
    %s120 = int_to_ptr.vmem [resolvable:$true] %s119
    %122 = dma.hbm_to_vmem [thread:$0]  %s110, 16, %s120, [#allocation3]
    %s123 = sadd.s32 %s12, 7
    %s124 = sld [smem:[#allocation5 + %s123]]
    %s125 = smul.addr %s124, 16
    %s126 = scalar_lea.hbm %s1, %s125
    %s127 = scalar_lea.vmem [#allocation2], 7
    // Predicated region
    $region30: #{tpu_custom_call.1} parent=1 // pred_check
      _
    $region31: #{tpu_custom_call.1} parent=1 // pred_check_branch
      %129 = sbr.rel target = $region33
    $region32: #{tpu_custom_call.1} parent=1 // pred_region
      %130 = sst [smem:[#allocation10]] [#allocation25]
      %131 = sst [smem:[#allocation11]] [#allocation24]
    $region33: #{tpu_custom_call.1} parent=1 // pred_fallthru
      _
    %133 = shalt.err (0)
    %s135 = sshll.u32 %s127, 4
    %s136 = int_to_ptr.vmem [resolvable:$true] %s135
    %138 = dma.hbm_to_vmem [thread:$0]  %s126, 16, %s136, [#allocation3]
    %s139 = smul.u32 1, 1
    %s140 = sshll.u32 %s139, 4
    %141 = dma.done [#allocation3], %s140
    %s142 = sshll.u32 %s139, 4
    %143 = dma.done [#allocation3], %s142
    %s144 = sshll.u32 %s139, 4
    %145 = dma.done [#allocation3], %s144
    %s146 = sshll.u32 %s139, 4
    %147 = dma.done [#allocation3], %s146
    %s148 = sshll.u32 %s139, 4
    %149 = dma.done [#allocation3], %s148
    %s150 = sshll.u32 %s139, 4
    %151 = dma.done [#allocation3], %s150
    %s152 = sshll.u32 %s139, 4
    %153 = dma.done [#allocation3], %s152
    %s154 = sshll.u32 %s139, 4
    %155 = dma.done [#allocation3], %s154
    %v156 = vld [vmem:[#allocation2] sm:$0xff]
    %157 = vst [vmem:[#allocation6] sm:$0xff] %v156
    // Predicated region
    $region34: #{tpu_custom_call.1} parent=1 // pred_check
      _
    $region35: #{tpu_custom_call.1} parent=1 // pred_check_branch
      %159 = sbr.rel (0) target = $region37
    $region36: #{tpu_custom_call.1} parent=1 // pred_region
      %s161 = ssub.s32 128, 128
      %162 = vsyncadd [#allocation7], %s161
      %s164 = sshll.u32 [#allocation6], 4
      %s165 = int_to_ptr.vmem [resolvable:$true] %s164
      %167 = dma.vmem_to_hbm [thread:$0]  %s165, 128, %s2, [#allocation7]
    $region37: #{tpu_custom_call.1} parent=1 // pred_fallthru
      _
    // Predicated region
    $region38: #{tpu_custom_call.1} parent=1 // pred_check
      _
    $region39: #{tpu_custom_call.1} parent=1 // pred_check_branch
      %169 = sbr.rel (0) target = $region41
    $region40: #{tpu_custom_call.1} parent=1 // pred_region
      %170 = dma.done [#allocation7], 128
    $region41: #{tpu_custom_call.1} parent=1 // pred_fallthru
      _
    %171 = vsyncpa [#allocation7], 1
  %172 = vsyncmov [#allocation3]
  %s173 = vpop.sfrf %172
  %p174 = scmp.eq.s32.totalorder %s173, 0
  %p175 = pneg %p174
  %177 = shalt.err (%p175)

</llo_original>
